<compile_context>
chip_gen: v5e
topology: v5e:2x2
jax: 0.10.0
libtpu: 0.0.40
codegen_flags: <defaults>
</compile_context>

<pallas_src>
import functools

import jax
import jax.numpy as jnp
from jax.experimental import pallas as pl
from jax.experimental.pallas import tpu as pltpu

HIDDEN = 128


def _round_up(x, m):
    return ((x + m - 1) // m) * m


def actor_critic_kernel(x_ref,
                        w1_ref, b1_ref,
                        w2_ref, b2_ref,
                        w3_ref, b3_ref,
                        wh_ref, bh_ref,
                        out_ref):
    # bf16 operands -> MXU, f32 accumulation; bias/ReLU kept in f32 (v5e has no
    # bf16 VPU, and f32 VALU work is in a different VLIW slot than the MXU).
    h = jnp.dot(x_ref[...].astype(jnp.bfloat16), w1_ref[...],
                preferred_element_type=jnp.float32) + b1_ref[...]
    h = jnp.maximum(h, 0.0)
    h = jnp.dot(h.astype(jnp.bfloat16), w2_ref[...],
                preferred_element_type=jnp.float32) + b2_ref[...]
    h = jnp.maximum(h, 0.0)
    h = jnp.dot(h.astype(jnp.bfloat16), w3_ref[...],
                preferred_element_type=jnp.float32) + b3_ref[...]
    h = jnp.maximum(h, 0.0)
    # Fused action|value head -> narrow (tb, head_out) f32 store (16x less HBM
    # writeback than a 128-wide padded slab; MXU cost is identical).
    out_ref[...] = jnp.dot(h.astype(jnp.bfloat16), wh_ref[...],
                           preferred_element_type=jnp.float32) + bh_ref[...]


def prepare_params(params):
    """One-time parameter prep: bf16 weight cast + action/value head fusion."""
    action_dim = params["wa"].shape[1]
    head_dim = action_dim + 1
    head_out = _round_up(head_dim, 8)  # >= 8, sublane-aligned, f32 output

    wh = jnp.zeros((HIDDEN, head_out), jnp.float32)
    wh = wh.at[:, :action_dim].set(params["wa"])
    wh = wh.at[:, action_dim:head_dim].set(params["wv"])
    bh = jnp.zeros((1, head_out), jnp.float32)
    bh = bh.at[:, :action_dim].set(params["ba"])
    bh = bh.at[:, action_dim:head_dim].set(params["bv"])

    return dict(
        w1=params["w1"].astype(jnp.bfloat16), b1=params["b1"],
        w2=params["w2"].astype(jnp.bfloat16), b2=params["b2"],
        w3=params["w3"].astype(jnp.bfloat16), b3=params["b3"],
        wh=wh.astype(jnp.bfloat16), bh=bh,
        action_dim=action_dim, head_out=head_out,
    )


def actor_critic_forward(x, prepped, *, tile_b=2048):
    """Full ActorCritic forward pass in one Pallas kernel.

    x: (B, state_dim) float32
    prepped: output of prepare_params()
    returns: (action_logits (B, action_dim) f32, value (B, 1) f32)
    """
    B, S = x.shape
    action_dim = prepped["action_dim"]
    head_dim = action_dim + 1
    head_out = prepped["head_out"]

    # Balanced batch tiling: >=2 tiles when possible so the "parallel" grid
    # axis actually splits across both TensorCores on v7x, and tb sized so the
    # ragged final block wastes at most a few rows.  No jnp.pad of x.
    n_tiles = max(2, pl.cdiv(B, tile_b))
    tb = _round_up(pl.cdiv(B, n_tiles), 8)
    grid = (pl.cdiv(B, tb),)

    def pinned(shape):
        # Full-array block + constant index_map: weights/biases stay resident
        # in VMEM across all grid steps instead of being re-DMA'd per tile.
        return pl.BlockSpec(shape, lambda i: (0, 0))

    flops = 2 * B * (S * HIDDEN + 2 * HIDDEN * HIDDEN + HIDDEN * head_out)
    bytes_accessed = (
        4 * B * S                                               # x (f32)
        + 2 * (S * HIDDEN + 2 * HIDDEN * HIDDEN + HIDDEN * head_out)  # bf16 W
        + 4 * (3 * HIDDEN + head_out)                           # f32 biases
        + 4 * B * head_out)                                     # f32 output

    out = pl.pallas_call(
        actor_critic_kernel,
        out_shape=jax.ShapeDtypeStruct((B, head_out), jnp.float32),
        grid=grid,
        in_specs=[
            pl.BlockSpec((tb, S), lambda i: (i, 0)),              # x: batch-tiled
            pinned((S, HIDDEN)),      pinned((1, HIDDEN)),        # fc1
            pinned((HIDDEN, HIDDEN)), pinned((1, HIDDEN)),        # fc2
            pinned((HIDDEN, HIDDEN)), pinned((1, HIDDEN)),        # fc3
            pinned((HIDDEN, head_out)), pinned((1, head_out)),    # fused head
        ],
        out_specs=pl.BlockSpec((tb, head_out), lambda i: (i, 0)),
        compiler_params=pltpu.CompilerParams(
            dimension_semantics=("parallel",),  # shard batch tiles across TCs
        ),
        cost_estimate=pl.CostEstimate(
            flops=flops, transcendentals=0, bytes_accessed=bytes_accessed),
    )(x,
      prepped["w1"], prepped["b1"],
      prepped["w2"], prepped["b2"],
      prepped["w3"], prepped["b3"],
      prepped["wh"], prepped["bh"])

    action_logits = out[:B, :action_dim]
    value = out[:B, action_dim:head_dim]
    return action_logits, value


def init_params(key, state_dim, action_dim, hidden=HIDDEN):
    """Deterministic init mimicking PyTorch nn.Linear default
    (U[-1/sqrt(fan_in), 1/sqrt(fan_in)]); weights stored as (in, out)."""
    def linear(key, fan_in, fan_out):
        kw, kb = jax.random.split(key)
        bound = 1.0 / jnp.sqrt(fan_in)
        w = jax.random.uniform(kw, (fan_in, fan_out), jnp.float32, -bound, bound)
        b = jax.random.uniform(kb, (1, fan_out), jnp.float32, -bound, bound)
        return w, b

    k1, k2, k3, ka, kv = jax.random.split(key, 5)
    w1, b1 = linear(k1, state_dim, hidden)
    w2, b2 = linear(k2, hidden, hidden)
    w3, b3 = linear(k3, hidden, hidden)
    wa, ba = linear(ka, hidden, action_dim)
    wv, bv = linear(kv, hidden, 1)
    return dict(w1=w1, b1=b1, w2=w2, b2=b2, w3=w3, b3=b3,
                wa=wa, ba=ba, wv=wv, bv=bv)


def reference_forward(x, p):
    h = jnp.maximum(x @ p["w1"] + p["b1"], 0.0)
    h = jnp.maximum(h @ p["w2"] + p["b2"], 0.0)
    h = jnp.maximum(h @ p["w3"] + p["b3"], 0.0)
    return h @ p["wa"] + p["ba"], h @ p["wv"] + p["bv"]


if __name__ == "__main__":
    key = jax.random.PRNGKey(0)
    kx, kp = jax.random.split(key)

    batch = 60        # non-multiple of the tile -> exercises ragged final block
    state_dim = 16
    action_dim = 4

    x = jax.random.normal(kx, (batch, state_dim), jnp.float32)
    params = init_params(kp, state_dim, action_dim)

    # One-time param prep (head fusion + bf16 cast), then a cached jit forward.
    prepped = prepare_params(params)
    forward = jax.jit(functools.partial(actor_critic_forward, prepped=prepped))

    action_logits, value = forward(x)
    jax.block_until_ready((action_logits, value))

    ref_a, ref_v = reference_forward(x, params)
    assert action_logits.shape == (batch, action_dim)
    assert value.shape == (batch, 1)
    # bf16 MXU operands with f32 accumulation -> relaxed tolerances vs f32 ref.
    assert jnp.allclose(action_logits, ref_a, atol=5e-2, rtol=5e-2)
    assert jnp.allclose(value, ref_v, atol=5e-2, rtol=5e-2)

    print("KERNEL_OK")
</pallas_src>

<mosaic_0001>
module attributes {stable_mosaic.version = 11 : i64} {
  func.func @actor_critic_kernel(%arg0: i32, %arg1: memref<32x16xf32, #tpu.memory_space<vmem>>, %arg2: memref<16x128xbf16, #tpu.memory_space<vmem>>, %arg3: memref<1x128xf32, #tpu.memory_space<vmem>>, %arg4: memref<128x128xbf16, #tpu.memory_space<vmem>>, %arg5: memref<1x128xf32, #tpu.memory_space<vmem>>, %arg6: memref<128x128xbf16, #tpu.memory_space<vmem>>, %arg7: memref<1x128xf32, #tpu.memory_space<vmem>>, %arg8: memref<128x8xbf16, #tpu.memory_space<vmem>>, %arg9: memref<1x8xf32, #tpu.memory_space<vmem>>, %arg10: memref<32x8xf32, #tpu.memory_space<vmem>>) attributes {dimension_semantics = [#tpu.dimension_semantics<parallel>], iteration_bounds = array<i64: 2>, scalar_prefetch = 0 : i64, scratch_operands = 0 : i64, tpu.core_type = #tpu.core_type<tc>, window_params = [{transform_indices = @transform_0, window_bounds = array<i64: 32, 16>}, {pipeline_mode = #tpu.pipeline_mode<synchronous>, transform_indices = @transform_1, window_bounds = array<i64: 16, 128>}, {pipeline_mode = #tpu.pipeline_mode<synchronous>, transform_indices = @transform_2, window_bounds = array<i64: 1, 128>}, {pipeline_mode = #tpu.pipeline_mode<synchronous>, transform_indices = @transform_3, window_bounds = array<i64: 128, 128>}, {pipeline_mode = #tpu.pipeline_mode<synchronous>, transform_indices = @transform_4, window_bounds = array<i64: 1, 128>}, {pipeline_mode = #tpu.pipeline_mode<synchronous>, transform_indices = @transform_5, window_bounds = array<i64: 128, 128>}, {pipeline_mode = #tpu.pipeline_mode<synchronous>, transform_indices = @transform_6, window_bounds = array<i64: 1, 128>}, {pipeline_mode = #tpu.pipeline_mode<synchronous>, transform_indices = @transform_7, window_bounds = array<i64: 128, 8>}, {pipeline_mode = #tpu.pipeline_mode<synchronous>, transform_indices = @transform_8, window_bounds = array<i64: 1, 8>}, {transform_indices = @transform_9, window_bounds = array<i64: 32, 8>}]} {
    %c0 = arith.constant 0 : index
    %c0_0 = arith.constant 0 : index
    %0 = vector.load %arg1[%c0, %c0_0] : memref<32x16xf32, #tpu.memory_space<vmem>>, vector<32x16xf32>
    %1 = arith.truncf %0 : vector<32x16xf32> to vector<32x16xbf16>
    %c0_1 = arith.constant 0 : index
    %c0_2 = arith.constant 0 : index
    %2 = vector.load %arg2[%c0_1, %c0_2] : memref<16x128xbf16, #tpu.memory_space<vmem>>, vector<16x128xbf16>
    %cst = arith.constant dense<0.000000e+00> : vector<32x128xf32>
    %3 = tpu.matmul %1, %2, %cst {dimension_numbers = #tpu.dot_dimension_numbers<[1], [0], [0], [1], [0, 0, 1, 1], [], []>} : vector<32x16xbf16>, vector<16x128xbf16>, vector<32x128xf32> -> vector<32x128xf32>
    %c0_3 = arith.constant 0 : index
    %c0_4 = arith.constant 0 : index
    %4 = vector.load %arg3[%c0_3, %c0_4] : memref<1x128xf32, #tpu.memory_space<vmem>>, vector<1x128xf32>
    %5 = vector.broadcast %4 : vector<1x128xf32> to vector<32x128xf32>
    %6 = arith.addf %3, %5 : vector<32x128xf32>
    %cst_5 = arith.constant 0.000000e+00 : f32
    %7 = vector.broadcast %cst_5 : f32 to vector<32x128xf32>
    %8 = arith.maximumf %6, %7 : vector<32x128xf32>
    %9 = arith.truncf %8 : vector<32x128xf32> to vector<32x128xbf16>
    %c0_6 = arith.constant 0 : index
    %c0_7 = arith.constant 0 : index
    %10 = vector.load %arg4[%c0_6, %c0_7] : memref<128x128xbf16, #tpu.memory_space<vmem>>, vector<128x128xbf16>
    %cst_8 = arith.constant dense<0.000000e+00> : vector<32x128xf32>
    %11 = tpu.matmul %9, %10, %cst_8 {dimension_numbers = #tpu.dot_dimension_numbers<[1], [0], [0], [1], [0, 0, 1, 1], [], []>} : vector<32x128xbf16>, vector<128x128xbf16>, vector<32x128xf32> -> vector<32x128xf32>
    %c0_9 = arith.constant 0 : index
    %c0_10 = arith.constant 0 : index
    %12 = vector.load %arg5[%c0_9, %c0_10] : memref<1x128xf32, #tpu.memory_space<vmem>>, vector<1x128xf32>
    %13 = vector.broadcast %12 : vector<1x128xf32> to vector<32x128xf32>
    %14 = arith.addf %11, %13 : vector<32x128xf32>
    %cst_11 = arith.constant 0.000000e+00 : f32
    %15 = vector.broadcast %cst_11 : f32 to vector<32x128xf32>
    %16 = arith.maximumf %14, %15 : vector<32x128xf32>
    %17 = arith.truncf %16 : vector<32x128xf32> to vector<32x128xbf16>
    %c0_12 = arith.constant 0 : index
    %c0_13 = arith.constant 0 : index
    %18 = vector.load %arg6[%c0_12, %c0_13] : memref<128x128xbf16, #tpu.memory_space<vmem>>, vector<128x128xbf16>
    %cst_14 = arith.constant dense<0.000000e+00> : vector<32x128xf32>
    %19 = tpu.matmul %17, %18, %cst_14 {dimension_numbers = #tpu.dot_dimension_numbers<[1], [0], [0], [1], [0, 0, 1, 1], [], []>} : vector<32x128xbf16>, vector<128x128xbf16>, vector<32x128xf32> -> vector<32x128xf32>
    %c0_15 = arith.constant 0 : index
    %c0_16 = arith.constant 0 : index
    %20 = vector.load %arg7[%c0_15, %c0_16] : memref<1x128xf32, #tpu.memory_space<vmem>>, vector<1x128xf32>
    %21 = vector.broadcast %20 : vector<1x128xf32> to vector<32x128xf32>
    %22 = arith.addf %19, %21 : vector<32x128xf32>
    %cst_17 = arith.constant 0.000000e+00 : f32
    %23 = vector.broadcast %cst_17 : f32 to vector<32x128xf32>
    %24 = arith.maximumf %22, %23 : vector<32x128xf32>
    %25 = arith.truncf %24 : vector<32x128xf32> to vector<32x128xbf16>
    %c0_18 = arith.constant 0 : index
    %c0_19 = arith.constant 0 : index
    %26 = vector.load %arg8[%c0_18, %c0_19] : memref<128x8xbf16, #tpu.memory_space<vmem>>, vector<128x8xbf16>
    %cst_20 = arith.constant dense<0.000000e+00> : vector<32x8xf32>
    %27 = tpu.matmul %25, %26, %cst_20 {dimension_numbers = #tpu.dot_dimension_numbers<[1], [0], [0], [1], [0, 0, 1, 1], [], []>} : vector<32x128xbf16>, vector<128x8xbf16>, vector<32x8xf32> -> vector<32x8xf32>
    %c0_21 = arith.constant 0 : index
    %c0_22 = arith.constant 0 : index
    %28 = vector.load %arg9[%c0_21, %c0_22] : memref<1x8xf32, #tpu.memory_space<vmem>>, vector<1x8xf32>
    %29 = vector.broadcast %28 : vector<1x8xf32> to vector<32x8xf32>
    %30 = arith.addf %27, %29 : vector<32x8xf32>
    %c0_23 = arith.constant 0 : index
    %c0_24 = arith.constant 0 : index
    %31 = vector.load %arg10[%c0_23, %c0_24] : memref<32x8xf32, #tpu.memory_space<vmem>>, vector<32x8xf32>
    tpu.vector_store %arg10[%c0_23, %c0_24], %30 {strides = array<i32>} : memref<32x8xf32, #tpu.memory_space<vmem>>, vector<32x8xf32>,
    return
  }
  func.func @transform_0(%arg0: i32) -> (i32, i32) {
    %c0_i32 = arith.constant 0 : i32
    %c0_i32_0 = arith.constant 0 : i32
    return %arg0, %c0_i32 : i32, i32
  }
  func.func @transform_1(%arg0: i32) -> (i32, i32) {
    %c0_i32 = arith.constant 0 : i32
    %c0_i32_0 = arith.constant 0 : i32
    %c0_i32_1 = arith.constant 0 : i32
    return %c0_i32, %c0_i32_0 : i32, i32
  }
  func.func @transform_2(%arg0: i32) -> (i32, i32) {
    %c0_i32 = arith.constant 0 : i32
    %c0_i32_0 = arith.constant 0 : i32
    %c0_i32_1 = arith.constant 0 : i32
    return %c0_i32, %c0_i32_0 : i32, i32
  }
  func.func @transform_3(%arg0: i32) -> (i32, i32) {
    %c0_i32 = arith.constant 0 : i32
    %c0_i32_0 = arith.constant 0 : i32
    %c0_i32_1 = arith.constant 0 : i32
    return %c0_i32, %c0_i32_0 : i32, i32
  }
  func.func @transform_4(%arg0: i32) -> (i32, i32) {
    %c0_i32 = arith.constant 0 : i32
    %c0_i32_0 = arith.constant 0 : i32
    %c0_i32_1 = arith.constant 0 : i32
    return %c0_i32, %c0_i32_0 : i32, i32
  }
  func.func @transform_5(%arg0: i32) -> (i32, i32) {
    %c0_i32 = arith.constant 0 : i32
    %c0_i32_0 = arith.constant 0 : i32
    %c0_i32_1 = arith.constant 0 : i32
    return %c0_i32, %c0_i32_0 : i32, i32
  }
  func.func @transform_6(%arg0: i32) -> (i32, i32) {
    %c0_i32 = arith.constant 0 : i32
    %c0_i32_0 = arith.constant 0 : i32
    %c0_i32_1 = arith.constant 0 : i32
    return %c0_i32, %c0_i32_0 : i32, i32
  }
  func.func @transform_7(%arg0: i32) -> (i32, i32) {
    %c0_i32 = arith.constant 0 : i32
    %c0_i32_0 = arith.constant 0 : i32
    %c0_i32_1 = arith.constant 0 : i32
    return %c0_i32, %c0_i32_0 : i32, i32
  }
  func.func @transform_8(%arg0: i32) -> (i32, i32) {
    %c0_i32 = arith.constant 0 : i32
    %c0_i32_0 = arith.constant 0 : i32
    %c0_i32_1 = arith.constant 0 : i32
    return %c0_i32, %c0_i32_0 : i32, i32
  }
  func.func @transform_9(%arg0: i32) -> (i32, i32) {
    %c0_i32 = arith.constant 0 : i32
    %c0_i32_0 = arith.constant 0 : i32
    return %arg0, %c0_i32 : i32, i32
  }
}

</mosaic_0001>

<llo_original>
// kernel: actor_critic_forward.1
$region0: #{actor_critic_forward.1}
  #allocation0 [shape = 'u32[]', space=smem, size = 0x4, offset = 0x4, fixed_abs, tag = 'smem constant byte address 0x4 - core index']
  #allocation1 [shape = 'u32[72,128]{1,0:T(1,128)}', space=vmem, size = 0x9000, scoped, tag = 'internal scratch']
  %s0 = inlined_call_operand.vmem [shape: f32[60,16], index: 0, kind: input, shape index: {}]
  %s1 = inlined_call_operand.vmem [shape: bf16[16,128], index: 1, kind: input, shape index: {}]
  %s2 = inlined_call_operand.vmem [shape: f32[1,128], index: 2, kind: input, shape index: {}]
  %s3 = inlined_call_operand.vmem [shape: bf16[128,128], index: 3, kind: input, shape index: {}]
  %s4 = inlined_call_operand.vmem [shape: f32[1,128], index: 4, kind: input, shape index: {}]
  %s5 = inlined_call_operand.hbm [shape: bf16[128,128], index: 5, kind: input, shape index: {}]
  %s6 = inlined_call_operand.vmem [shape: f32[1,128], index: 6, kind: input, shape index: {}]
  %s7 = inlined_call_operand.hbm [shape: bf16[128,8], index: 7, kind: input, shape index: {}]
  %s8 = inlined_call_operand.vmem [shape: f32[1,8], index: 8, kind: input, shape index: {}]
  %s9 = inlined_call_operand.vmem [shape: f32[60,8], index: 9, kind: output, shape index: {}]
  %s10 = sld [smem:[#allocation0]]
  $region77: #{actor_critic_forward.1} parent=0
    _
  %s12 = ssub.s32 1, %s10
  %s13 = scalar_select 0, %s12, %s10
  $region1: #{actor_critic_forward.1} parent=0
    #allocation2 [shape = 'u8[32768]{0}', space=vmem, size = 0x8000, scoped, tag = 'input window, operand 5, single buffered']
    #allocation3 [shape = 's32[2]{0}', space=sflag, size = 0x8, scoped, tag = 'scoped memory for actor_critic_forward.1']
    #allocation4 [shape = 'u8[32768]{0}', space=vmem, size = 0x8000, scoped, tag = 'input window, operand 7, single buffered']
    #allocation5 [shape = 's32[1]{0}', space=sflag, size = 0x4, scoped, tag = 'scoped memory for actor_critic_forward.1']
    %14 = vsyncpa [#allocation3], 0
    %15 = vsyncpa [#allocation5], 0
    loop: start=0, step=1, limit=4
    $region2: #{actor_critic_forward.1} parent=1 // loop_pre_header
      _
    $region3: #{actor_critic_forward.1} parent=1 // loop_header
      %s17 = sphi 0, %s21
      %p18 = scmp.ge.s32.totalorder %s17, 4
      %s27 = sphi 0, %s29
      %s30 = sphi 0, %s27
      %s31 = sphi 0, %s30
      %s47 = sphi 0, %s31
      %s51 = sphi 0, %s51
      %s53 = sphi 0, %s51
      %s54 = sphi 0, %s53
      %s68 = sphi 0, %s54
      %s72 = sphi 0, %s72
      %s74 = sphi 0, %s72
      %s75 = sphi 0, %s74
      %s89 = sphi 0, %s75
      %s93 = sphi 0, %s93
      %s95 = sphi 0, %s93
      %s96 = sphi 0, %s95
      %s110 = sphi 0, %s96
      %s114 = sphi 0, %s114
      %s116 = sphi 0, %s114
      %s117 = sphi 0, %s116
      %s131 = sphi 0, %s117
      %s135 = sphi 0, %s135
      %s137 = sphi 0, %s135
      %s138 = sphi 0, %s137
      %s152 = sphi 0, %s138
      %s156 = sphi 0, %s156
      %s158 = sphi 0, %s156
      %s159 = sphi 0, %s158
      %s173 = sphi 0, %s159
      %s177 = sphi 0, %s177
      %s179 = sphi 0, %s177
      %s180 = sphi 0, %s179
      %s194 = sphi 0, %s180
      %s198 = sphi 0, %s198
      %s200 = sphi 0, %s198
      %s201 = sphi 0, %s200
      %s215 = sphi 0, %s201
      %s221 = sphi 0, %s223
      %s224 = sphi 0, %s221
      %s225 = sphi 0, %s224
      %s241 = sphi 0, %s225
    $region4: #{actor_critic_forward.1} parent=1 // loop_header_branch
      %20 = sbr.rel (%p18) target = $region8
    $region5: #{actor_critic_forward.1} parent=1 // loop_body
      %s22 = ssub.s32 %s17, 1
      %s23 = ssub.s32 %s17, 2
      %s24 = sadd.s32 %s17, 1
      %s25 = ssub.s32 %s17, %s24
      %p26 = scmp.eq.s32.totalorder %s25, 0
      %s28 = sadd.s32 %s27, 1
      %s29 = scalar_select %p26, %s27, %s28
      %p32 = pneg %p26
      %p33 = scmp.eq.s32.totalorder %s17, 1
      %p34 = por %p32, %p33
      %p35 = scmp.ne.s32.totalorder %s27, %s30
      %p36 = scmp.eq.s32.totalorder %s17, 0
      %p37 = por %p35, %p36
      %p38 = scmp.ne.s32.totalorder %s27, %s30
      %p39 = scmp.eq.s32.totalorder %s22, 1
      %p40 = por %p38, %p39
      %p41 = scmp.ne.s32.totalorder %s30, %s31
      %p42 = scmp.eq.s32.totalorder %s22, 0
      %p43 = por %p41, %p42
      %p44 = scmp.ne.s32.totalorder %s30, %s31
      %p45 = scmp.eq.s32.totalorder %s23, 1
      %p46 = por %p44, %p45
      %p48 = scmp.ne.s32.totalorder %s31, %s47
      %p49 = scmp.eq.s32.totalorder %s23, 0
      %p50 = por %p48, %p49
      %s52 = sadd.s32 %s51, 1
      %p55 = scmp.eq.s32.totalorder %s17, 1
      %p56 = scmp.ne.s32.totalorder %s51, %s53
      %p57 = scmp.eq.s32.totalorder %s17, 0
      %p58 = por %p56, %p57
      %p59 = scmp.ne.s32.totalorder %s51, %s53
      %p60 = scmp.eq.s32.totalorder %s22, 1
      %p61 = por %p59, %p60
      %p62 = scmp.ne.s32.totalorder %s53, %s54
      %p63 = scmp.eq.s32.totalorder %s22, 0
      %p64 = por %p62, %p63
      %p65 = scmp.ne.s32.totalorder %s53, %s54
      %p66 = scmp.eq.s32.totalorder %s23, 1
      %p67 = por %p65, %p66
      %p69 = scmp.ne.s32.totalorder %s54, %s68
      %p70 = scmp.eq.s32.totalorder %s23, 0
      %p71 = por %p69, %p70
      %s73 = sadd.s32 %s72, 1
      %p76 = scmp.eq.s32.totalorder %s17, 1
      %p77 = scmp.ne.s32.totalorder %s72, %s74
      %p78 = scmp.eq.s32.totalorder %s17, 0
      %p79 = por %p77, %p78
      %p80 = scmp.ne.s32.totalorder %s72, %s74
      %p81 = scmp.eq.s32.totalorder %s22, 1
      %p82 = por %p80, %p81
      %p83 = scmp.ne.s32.totalorder %s74, %s75
      %p84 = scmp.eq.s32.totalorder %s22, 0
      %p85 = por %p83, %p84
      %p86 = scmp.ne.s32.totalorder %s74, %s75
      %p87 = scmp.eq.s32.totalorder %s23, 1
      %p88 = por %p86, %p87
      %p90 = scmp.ne.s32.totalorder %s75, %s89
      %p91 = scmp.eq.s32.totalorder %s23, 0
      %p92 = por %p90, %p91
      %s94 = sadd.s32 %s93, 1
      %p97 = scmp.eq.s32.totalorder %s17, 1
      %p98 = scmp.ne.s32.totalorder %s93, %s95
      %p99 = scmp.eq.s32.totalorder %s17, 0
      %p100 = por %p98, %p99
      %p101 = scmp.ne.s32.totalorder %s93, %s95
      %p102 = scmp.eq.s32.totalorder %s22, 1
      %p103 = por %p101, %p102
      %p104 = scmp.ne.s32.totalorder %s95, %s96
      %p105 = scmp.eq.s32.totalorder %s22, 0
      %p106 = por %p104, %p105
      %p107 = scmp.ne.s32.totalorder %s95, %s96
      %p108 = scmp.eq.s32.totalorder %s23, 1
      %p109 = por %p107, %p108
      %p111 = scmp.ne.s32.totalorder %s96, %s110
      %p112 = scmp.eq.s32.totalorder %s23, 0
      %p113 = por %p111, %p112
      %s115 = sadd.s32 %s114, 1
      %p118 = scmp.eq.s32.totalorder %s17, 1
      %p119 = scmp.ne.s32.totalorder %s114, %s116
      %p120 = scmp.eq.s32.totalorder %s17, 0
      %p121 = por %p119, %p120
      %p122 = scmp.ne.s32.totalorder %s114, %s116
      %p123 = scmp.eq.s32.totalorder %s22, 1
      %p124 = por %p122, %p123
      %p125 = scmp.ne.s32.totalorder %s116, %s117
      %p126 = scmp.eq.s32.totalorder %s22, 0
      %p127 = por %p125, %p126
      %p128 = scmp.ne.s32.totalorder %s116, %s117
      %p129 = scmp.eq.s32.totalorder %s23, 1
      %p130 = por %p128, %p129
      %p132 = scmp.ne.s32.totalorder %s117, %s131
      %p133 = scmp.eq.s32.totalorder %s23, 0
      %p134 = por %p132, %p133
      %s136 = sadd.s32 %s135, 1
      %p139 = scmp.eq.s32.totalorder %s17, 1
      %p140 = scmp.ne.s32.totalorder %s135, %s137
      %p141 = scmp.eq.s32.totalorder %s17, 0
      %p142 = por %p140, %p141
      %p143 = scmp.ne.s32.totalorder %s135, %s137
      %p144 = scmp.eq.s32.totalorder %s22, 1
      %p145 = por %p143, %p144
      %p146 = scmp.ne.s32.totalorder %s137, %s138
      %p147 = scmp.eq.s32.totalorder %s22, 0
      %p148 = por %p146, %p147
      %p149 = scmp.ne.s32.totalorder %s137, %s138
      %p150 = scmp.eq.s32.totalorder %s23, 1
      %p151 = por %p149, %p150
      %p153 = scmp.ne.s32.totalorder %s138, %s152
      %p154 = scmp.eq.s32.totalorder %s23, 0
      %p155 = por %p153, %p154
      %s157 = sadd.s32 %s156, 1
      %p160 = scmp.eq.s32.totalorder %s17, 1
      %p161 = scmp.ne.s32.totalorder %s156, %s158
      %p162 = scmp.eq.s32.totalorder %s17, 0
      %p163 = por %p161, %p162
      %p164 = scmp.ne.s32.totalorder %s156, %s158
      %p165 = scmp.eq.s32.totalorder %s22, 1
      %p166 = por %p164, %p165
      %p167 = scmp.ne.s32.totalorder %s158, %s159
      %p168 = scmp.eq.s32.totalorder %s22, 0
      %p169 = por %p167, %p168
      %p170 = scmp.ne.s32.totalorder %s158, %s159
      %p171 = scmp.eq.s32.totalorder %s23, 1
      %p172 = por %p170, %p171
      %p174 = scmp.ne.s32.totalorder %s159, %s173
      %p175 = scmp.eq.s32.totalorder %s23, 0
      %p176 = por %p174, %p175
      %s178 = sadd.s32 %s177, 1
      %p181 = scmp.eq.s32.totalorder %s17, 1
      %p182 = scmp.ne.s32.totalorder %s177, %s179
      %p183 = scmp.eq.s32.totalorder %s17, 0
      %p184 = por %p182, %p183
      %p185 = scmp.ne.s32.totalorder %s177, %s179
      %p186 = scmp.eq.s32.totalorder %s22, 1
      %p187 = por %p185, %p186
      %p188 = scmp.ne.s32.totalorder %s179, %s180
      %p189 = scmp.eq.s32.totalorder %s22, 0
      %p190 = por %p188, %p189
      %p191 = scmp.ne.s32.totalorder %s179, %s180
      %p192 = scmp.eq.s32.totalorder %s23, 1
      %p193 = por %p191, %p192
      %p195 = scmp.ne.s32.totalorder %s180, %s194
      %p196 = scmp.eq.s32.totalorder %s23, 0
      %p197 = por %p195, %p196
      %s199 = sadd.s32 %s198, 1
      %p202 = scmp.eq.s32.totalorder %s17, 1
      %p203 = scmp.ne.s32.totalorder %s198, %s200
      %p204 = scmp.eq.s32.totalorder %s17, 0
      %p205 = por %p203, %p204
      %p206 = scmp.ne.s32.totalorder %s198, %s200
      %p207 = scmp.eq.s32.totalorder %s22, 1
      %p208 = por %p206, %p207
      %p209 = scmp.ne.s32.totalorder %s200, %s201
      %p210 = scmp.eq.s32.totalorder %s22, 0
      %p211 = por %p209, %p210
      %p212 = scmp.ne.s32.totalorder %s200, %s201
      %p213 = scmp.eq.s32.totalorder %s23, 1
      %p214 = por %p212, %p213
      %p216 = scmp.ne.s32.totalorder %s201, %s215
      %p217 = scmp.eq.s32.totalorder %s23, 0
      %p218 = por %p216, %p217
      %s219 = ssub.s32 %s17, %s24
      %p220 = scmp.eq.s32.totalorder %s219, 0
      %s222 = sadd.s32 %s221, 1
      %s223 = scalar_select %p220, %s221, %s222
      %p226 = pneg %p220
      %p227 = scmp.eq.s32.totalorder %s17, 1
      %p228 = por %p226, %p227
      %p229 = scmp.ne.s32.totalorder %s221, %s224
      %p230 = scmp.eq.s32.totalorder %s17, 0
      %p231 = por %p229, %p230
      %p232 = scmp.ne.s32.totalorder %s221, %s224
      %p233 = scmp.eq.s32.totalorder %s22, 1
      %p234 = por %p232, %p233
      %p235 = scmp.ne.s32.totalorder %s224, %s225
      %p236 = scmp.eq.s32.totalorder %s22, 0
      %p237 = por %p235, %p236
      %p238 = scmp.ne.s32.totalorder %s224, %s225
      %p239 = scmp.eq.s32.totalorder %s23, 1
      %p240 = por %p238, %p239
      %p242 = scmp.ne.s32.totalorder %s225, %s241
      %p243 = scmp.eq.s32.totalorder %s23, 0
      %p244 = por %p242, %p243
      %p245 = scmp.le.s32.totalorder 1, %s17
      %p246 = scmp.lt.s32.totalorder %s17, 3
      %p247 = pnand %p245, %p246
      %p248 = pneg %p247
      // Predicated region
      $region9: #{actor_critic_forward.1} parent=5 // pred_check
        _
      $region10: #{actor_critic_forward.1} parent=5 // pred_check_branch
        %250 = sbr.rel (%p247) target = $region12
      $region11: #{actor_critic_forward.1} parent=5 // pred_region
        %s251 = ssub.s32 %s17, 1
        // Predicated region
        $region13: #{actor_critic_forward.1} parent=11 // pred_check
          %p252 = pneg %p64
        $region14: #{actor_critic_forward.1} parent=11 // pred_check_branch
          %254 = sbr.rel (%p252) target = $region16
        $region15: #{actor_critic_forward.1} parent=11 // pred_region
          _
        $region16: #{actor_critic_forward.1} parent=11 // pred_fallthru
          _
        // Predicated region
        $region17: #{actor_critic_forward.1} parent=11 // pred_check
          %p255 = pneg %p85
        $region18: #{actor_critic_forward.1} parent=11 // pred_check_branch
          %257 = sbr.rel (%p255) target = $region20
        $region19: #{actor_critic_forward.1} parent=11 // pred_region
          _
        $region20: #{actor_critic_forward.1} parent=11 // pred_fallthru
          _
        // Predicated region
        $region21: #{actor_critic_forward.1} parent=11 // pred_check
          %p258 = pneg %p106
        $region22: #{actor_critic_forward.1} parent=11 // pred_check_branch
          %260 = sbr.rel (%p258) target = $region24
        $region23: #{actor_critic_forward.1} parent=11 // pred_region
          _
        $region24: #{actor_critic_forward.1} parent=11 // pred_fallthru
          _
        // Predicated region
        $region25: #{actor_critic_forward.1} parent=11 // pred_check
          %p261 = pneg %p127
        $region26: #{actor_critic_forward.1} parent=11 // pred_check_branch
          %263 = sbr.rel (%p261) target = $region28
        $region27: #{actor_critic_forward.1} parent=11 // pred_region
          _
        $region28: #{actor_critic_forward.1} parent=11 // pred_fallthru
          _
        // Predicated region
        $region29: #{actor_critic_forward.1} parent=11 // pred_check
          %p264 = pneg %p148
        $region30: #{actor_critic_forward.1} parent=11 // pred_check_branch
          %266 = sbr.rel (%p264) target = $region32
        $region31: #{actor_critic_forward.1} parent=11 // pred_region
          %268 = vsyncadd [#allocation3], 0
          %s269 = sshll.u32 %s5, 4
          %s270 = int_to_ptr.hbm [resolvable:$true] %s269
          %s271 = sshll.u32 [#allocation2], 4
          %s272 = int_to_ptr.vmem [resolvable:$true] %s271
          %277 = dma.hbm_to_vmem [thread:$0]  %s270, 1024, %s272, [#allocation3], 64, 64, 4
        $region32: #{actor_critic_forward.1} parent=11 // pred_fallthru
          _
        // Predicated region
        $region33: #{actor_critic_forward.1} parent=11 // pred_check
          %p278 = pneg %p169
        $region34: #{actor_critic_forward.1} parent=11 // pred_check_branch
          %280 = sbr.rel (%p278) target = $region36
        $region35: #{actor_critic_forward.1} parent=11 // pred_region
          _
        $region36: #{actor_critic_forward.1} parent=11 // pred_fallthru
          _
        // Predicated region
        $region37: #{actor_critic_forward.1} parent=11 // pred_check
          %p281 = pneg %p190
        $region38: #{actor_critic_forward.1} parent=11 // pred_check_branch
          %283 = sbr.rel (%p281) target = $region40
        $region39: #{actor_critic_forward.1} parent=11 // pred_region
          %285 = vsyncadd [#allocation5], 0
          %s286 = sshll.u32 %s7, 4
          %s287 = int_to_ptr.hbm [resolvable:$true] %s286
          %s288 = sshll.u32 [#allocation4], 4
          %s289 = int_to_ptr.vmem [resolvable:$true] %s288
          %294 = dma.hbm_to_vmem [thread:$0]  %s287, 1024, %s289, [#allocation5], 64, 64, 4
        $region40: #{actor_critic_forward.1} parent=11 // pred_fallthru
          _
        // Predicated region
        $region41: #{actor_critic_forward.1} parent=11 // pred_check
          %p295 = pneg %p211
        $region42: #{actor_critic_forward.1} parent=11 // pred_check_branch
          %297 = sbr.rel (%p295) target = $region44
        $region43: #{actor_critic_forward.1} parent=11 // pred_region
          _
        $region44: #{actor_critic_forward.1} parent=11 // pred_fallthru
          _
      $region12: #{actor_critic_forward.1} parent=5 // pred_fallthru
        _
      %p298 = scmp.lt.s32.totalorder %s17, 2
      // Predicated region
      $region45: #{actor_critic_forward.1} parent=5 // pred_check
        %p299 = pneg %p298
      $region46: #{actor_critic_forward.1} parent=5 // pred_check_branch
        %301 = sbr.rel (%p299) target = $region48
      $region47: #{actor_critic_forward.1} parent=5 // pred_region
        // Predicated region
        $region49: #{actor_critic_forward.1} parent=47 // pred_check
          %p302 = pneg %p37
        $region50: #{actor_critic_forward.1} parent=47 // pred_check_branch
          %304 = sbr.rel (%p302) target = $region52
        $region51: #{actor_critic_forward.1} parent=47 // pred_region
          %s305 = smul.u32 4, %s17
          %p306 = scmp.lt.s32.totalorder %s305, 7
          %s307 = scalar_select %p306, %s305, 7
          %s308 = smul.addr %s307, 8
          %s309 = scalar_lea.vmem %s0, %s308
          %s310 = smul.u32 4, %s17
        $region52: #{actor_critic_forward.1} parent=47 // pred_fallthru
          _
      $region48: #{actor_critic_forward.1} parent=5 // pred_fallthru
        _
      %p311 = scmp.le.s32.totalorder 1, %s17
      %p312 = scmp.lt.s32.totalorder %s17, 3
      %p313 = pnand %p311, %p312
      %p314 = pneg %p313
      // Predicated region
      $region53: #{actor_critic_forward.1} parent=5 // pred_check
        _
      $region54: #{actor_critic_forward.1} parent=5 // pred_check_branch
        %316 = sbr.rel (%p313) target = $region56
      $region55: #{actor_critic_forward.1} parent=5 // pred_region
        %s317 = ssub.s32 %s17, 1
        // Predicated region
        $region57: #{actor_critic_forward.1} parent=55 // pred_check
          %p318 = pneg %p148
        $region58: #{actor_critic_forward.1} parent=55 // pred_check_branch
          %320 = sbr.rel (%p318) target = $region60
        $region59: #{actor_critic_forward.1} parent=55 // pred_region
          %322 = dma.done [#allocation3], 1024
        $region60: #{actor_critic_forward.1} parent=55 // pred_fallthru
          _
        // Predicated region
        $region61: #{actor_critic_forward.1} parent=55 // pred_check
          %p323 = pneg %p190
        $region62: #{actor_critic_forward.1} parent=55 // pred_check_branch
          %325 = sbr.rel (%p323) target = $region64
        $region63: #{actor_critic_forward.1} parent=55 // pred_region
          %327 = dma.done [#allocation5], 1024
        $region64: #{actor_critic_forward.1} parent=55 // pred_fallthru
          _
        %s328 = smul.u32 4, %s22
        %p329 = scmp.lt.s32.totalorder %s328, 7
        %s330 = scalar_select %p329, %s328, 7
        %s331 = smul.addr %s330, 8
        %s332 = scalar_lea.vmem %s0, %s331
        %p333 = pneg %p43
        %p334 = pneg %p40
        %p335 = pneg %p64
        %p336 = pneg %p61
        %p337 = pneg %p85
        %p338 = pneg %p82
        %p339 = pneg %p106
        %p340 = pneg %p103
        %p341 = pneg %p127
        %p342 = pneg %p124
        %p343 = pneg %p148
        %p344 = pneg %p145
        %p345 = pneg %p169
        %p346 = pneg %p166
        %p347 = pneg %p190
        %p348 = pneg %p187
        %p349 = pneg %p211
        %p350 = pneg %p208
        %p351 = pneg %p237
        %p352 = pneg %p234
        %s353 = smul.u32 4, %s22
        %p354 = scmp.lt.s32.totalorder %s353, 7
        %s355 = scalar_select %p354, %s353, 7
        %s356 = smul.addr %s355, 8
        %s357 = scalar_lea.vmem %s9, %s356
        %s358 = smul.u32 4, %s22
        %p359 = scmp.lt.s32.totalorder %s358, 7
        %s360 = scalar_select %p359, %s358, 7
        %s361 = smul.addr %s360, 8
        %s362 = scalar_lea.vmem %s0, %s361
        %s363 = smul.u32 4, %s22
        %s364 = smul.u32 4, %s22
        %p365 = scmp.lt.s32.totalorder %s364, 7
        %s366 = scalar_select %p365, %s364, 7
        %s367 = smul.addr %s366, 8
        %s368 = scalar_lea.vmem %s9, %s367
        %s369 = smul.u32 4, %s22
        %v371 = vld [vmem:[%s362] sm:$0xff]
        %v372 = vld [vmem:[%s362 + $0x8] sm:$0xff]
        %v373 = vld [vmem:[%s362 + $0x10] sm:$0xff]
        %v374 = vld [vmem:[%s362 + $0x18] sm:$0xff]
        %v375 = vpack.c.bf16 %v372, %v371
        %v376 = vpack.c.bf16 %v374, %v373
        %v377 = vld [vmem:[%s1] sm:$0xf]
        %v378 = vld [vmem:[%s1 + $0x4] sm:$0xf]
        %v379 = vld [vmem:[%s2] sm:$0x1]
        %v381 = vperm.slane %v379, 0
        %v385 = vunpack.c.l.b16 %v377
        %v386 = vunpack.c.l.b16 %v378
        %v387 = vpack.c.b16 %v386, %v385
        %vm389 = vcmask 130048
        %v391 = vsel %vm389, %v375, 0
        %v394 = vsel %vm389, %v376, 0
        %396 = vmatpush.bf16.msra.mxu0 0
        %397 = vmatpush.bf16.msra.mxu0 0
        %398 = vmatpush.bf16.msra.mxu0 0
        %399 = vmatpush.bf16.msra.mxu0 0
        %400 = vmatpush.bf16.msra.mxu0 0
        %401 = vmatpush.bf16.msra.mxu0 0
        %402 = vmatpush.bf16.msra.mxu0 0
        %403 = vmatpush.bf16.msra.mxu0 %v387
        %404 = vmatmul.bf16.gmra.mxu0 %v391
        %v405 = vpop.f32.mrf.mxu0
        %v406 = vadd.f32 %v381, %v405
        %v407 = vpop.f32.mrf.mxu0
        %v408 = vadd.f32 %v381, %v407
        %409 = vmatmul.bf16.gmra.mxu0 %v394
        %v410 = vpop.f32.mrf.mxu0
        %v411 = vadd.f32 %v381, %v410
        %v412 = vpop.f32.mrf.mxu0
        %v413 = vadd.f32 %v381, %v412
        %414 = vdwg.mxu0
        %v415 = vmax.f32 %v406, 0.0
        %v416 = vmax.f32 %v408, 0.0
        %v417 = vmax.f32 %v411, 0.0
        %v418 = vmax.f32 %v413, 0.0
        %v419 = vpack.c.bf16 %v416, %v415
        %v420 = vpack.c.bf16 %v418, %v417
        %v421 = vld [vmem:[%s3] sm:$0xf]
        %v422 = vld [vmem:[%s3 + $0x4] sm:$0xf]
        %v423 = vld [vmem:[%s3 + $0x8] sm:$0xf]
        %v424 = vld [vmem:[%s3 + $0xc] sm:$0xf]
        %v425 = vld [vmem:[%s3 + $0x10] sm:$0xf]
        %v426 = vld [vmem:[%s3 + $0x14] sm:$0xf]
        %v427 = vld [vmem:[%s3 + $0x18] sm:$0xf]
        %v428 = vld [vmem:[%s3 + $0x1c] sm:$0xf]
        %v429 = vld [vmem:[%s3 + $0x20] sm:$0xf]
        %v430 = vld [vmem:[%s3 + $0x24] sm:$0xf]
        %v431 = vld [vmem:[%s3 + $0x28] sm:$0xf]
        %v432 = vld [vmem:[%s3 + $0x2c] sm:$0xf]
        %v433 = vld [vmem:[%s3 + $0x30] sm:$0xf]
        %v434 = vld [vmem:[%s3 + $0x34] sm:$0xf]
        %v435 = vld [vmem:[%s3 + $0x38] sm:$0xf]
        %v436 = vld [vmem:[%s3 + $0x3c] sm:$0xf]
        %v437 = vld [vmem:[%s4] sm:$0x1]
        %v439 = vperm.slane %v437, 0
        %v457 = vunpack.c.l.b16 %v421
        %v458 = vunpack.c.l.b16 %v422
        %v459 = vunpack.c.l.b16 %v423
        %v460 = vunpack.c.l.b16 %v424
        %v461 = vunpack.c.l.b16 %v425
        %v462 = vunpack.c.l.b16 %v426
        %v463 = vunpack.c.l.b16 %v427
        %v464 = vunpack.c.l.b16 %v428
        %v465 = vunpack.c.l.b16 %v429
        %v466 = vunpack.c.l.b16 %v430
        %v467 = vunpack.c.l.b16 %v431
        %v468 = vunpack.c.l.b16 %v432
        %v469 = vunpack.c.l.b16 %v433
        %v470 = vunpack.c.l.b16 %v434
        %v471 = vunpack.c.l.b16 %v435
        %v472 = vunpack.c.l.b16 %v436
        %v473 = vpack.c.b16 %v458, %v457
        %v474 = vpack.c.b16 %v460, %v459
        %v475 = vpack.c.b16 %v462, %v461
        %v476 = vpack.c.b16 %v464, %v463
        %v477 = vpack.c.b16 %v466, %v465
        %v478 = vpack.c.b16 %v468, %v467
        %v479 = vpack.c.b16 %v470, %v469
        %v480 = vpack.c.b16 %v472, %v471
        %489 = vmatpush.bf16.msra.mxu0 %v480
        %490 = vmatpush.bf16.msra.mxu0 %v479
        %491 = vmatpush.bf16.msra.mxu0 %v478
        %492 = vmatpush.bf16.msra.mxu0 %v477
        %493 = vmatpush.bf16.msra.mxu0 %v476
        %494 = vmatpush.bf16.msra.mxu0 %v475
        %495 = vmatpush.bf16.msra.mxu0 %v474
        %496 = vmatpush.bf16.msra.mxu0 %v473
        %497 = vmatmul.bf16.gmra.mxu0 %v419
        %v498 = vpop.f32.mrf.mxu0
        %v499 = vadd.f32 %v439, %v498
        %v500 = vpop.f32.mrf.mxu0
        %v501 = vadd.f32 %v439, %v500
        %502 = vmatmul.bf16.gmra.mxu0 %v420
        %v503 = vpop.f32.mrf.mxu0
        %v504 = vadd.f32 %v439, %v503
        %v505 = vpop.f32.mrf.mxu0
        %v506 = vadd.f32 %v439, %v505
        %507 = vdwg.mxu0
        %v508 = vmax.f32 %v499, 0.0
        %v509 = vmax.f32 %v501, 0.0
        %v510 = vmax.f32 %v504, 0.0
        %v511 = vmax.f32 %v506, 0.0
        %v512 = vpack.c.bf16 %v509, %v508
        %v513 = vpack.c.bf16 %v511, %v510
        %v514 = vld [vmem:[#allocation2] sm:$0xf]
        %v515 = vld [vmem:[#allocation2 + $0x4] sm:$0xf]
        %v516 = vld [vmem:[#allocation2 + $0x8] sm:$0xf]
        %v517 = vld [vmem:[#allocation2 + $0xc] sm:$0xf]
        %v518 = vld [vmem:[#allocation2 + $0x10] sm:$0xf]
        %v519 = vld [vmem:[#allocation2 + $0x14] sm:$0xf]
        %v520 = vld [vmem:[#allocation2 + $0x18] sm:$0xf]
        %v521 = vld [vmem:[#allocation2 + $0x1c] sm:$0xf]
        %v522 = vld [vmem:[#allocation2 + $0x20] sm:$0xf]
        %v523 = vld [vmem:[#allocation2 + $0x24] sm:$0xf]
        %v524 = vld [vmem:[#allocation2 + $0x28] sm:$0xf]
        %v525 = vld [vmem:[#allocation2 + $0x2c] sm:$0xf]
        %v526 = vld [vmem:[#allocation2 + $0x30] sm:$0xf]
        %v527 = vld [vmem:[#allocation2 + $0x34] sm:$0xf]
        %v528 = vld [vmem:[#allocation2 + $0x38] sm:$0xf]
        %v529 = vld [vmem:[#allocation2 + $0x3c] sm:$0xf]
        %v530 = vld [vmem:[%s6] sm:$0x1]
        %v532 = vperm.slane %v530, 0
        %v550 = vunpack.c.l.b16 %v514
        %v551 = vunpack.c.l.b16 %v515
        %v552 = vunpack.c.l.b16 %v516
        %v553 = vunpack.c.l.b16 %v517
        %v554 = vunpack.c.l.b16 %v518
        %v555 = vunpack.c.l.b16 %v519
        %v556 = vunpack.c.l.b16 %v520
        %v557 = vunpack.c.l.b16 %v521
        %v558 = vunpack.c.l.b16 %v522
        %v559 = vunpack.c.l.b16 %v523
        %v560 = vunpack.c.l.b16 %v524
        %v561 = vunpack.c.l.b16 %v525
        %v562 = vunpack.c.l.b16 %v526
        %v563 = vunpack.c.l.b16 %v527
        %v564 = vunpack.c.l.b16 %v528
        %v565 = vunpack.c.l.b16 %v529
        %v566 = vpack.c.b16 %v551, %v550
        %v567 = vpack.c.b16 %v553, %v552
        %v568 = vpack.c.b16 %v555, %v554
        %v569 = vpack.c.b16 %v557, %v556
        %v570 = vpack.c.b16 %v559, %v558
        %v571 = vpack.c.b16 %v561, %v560
        %v572 = vpack.c.b16 %v563, %v562
        %v573 = vpack.c.b16 %v565, %v564
        %582 = vmatpush.bf16.msra.mxu0 %v573
        %583 = vmatpush.bf16.msra.mxu0 %v572
        %584 = vmatpush.bf16.msra.mxu0 %v571
        %585 = vmatpush.bf16.msra.mxu0 %v570
        %586 = vmatpush.bf16.msra.mxu0 %v569
        %587 = vmatpush.bf16.msra.mxu0 %v568
        %588 = vmatpush.bf16.msra.mxu0 %v567
        %589 = vmatpush.bf16.msra.mxu0 %v566
        %590 = vmatmul.bf16.gmra.mxu0 %v512
        %v591 = vpop.f32.mrf.mxu0
        %v592 = vadd.f32 %v532, %v591
        %v593 = vpop.f32.mrf.mxu0
        %v594 = vadd.f32 %v532, %v593
        %595 = vmatmul.bf16.gmra.mxu0 %v513
        %v596 = vpop.f32.mrf.mxu0
        %v597 = vadd.f32 %v532, %v596
        %v598 = vpop.f32.mrf.mxu0
        %v599 = vadd.f32 %v532, %v598
        %600 = vdwg.mxu0
        %v601 = vmax.f32 %v592, 0.0
        %v602 = vmax.f32 %v594, 0.0
        %v603 = vmax.f32 %v597, 0.0
        %v604 = vmax.f32 %v599, 0.0
        %v605 = vpack.c.bf16 %v602, %v601
        %v606 = vpack.c.bf16 %v604, %v603
        %v607 = vld [vmem:[#allocation4] sm:$0xf]
        %v608 = vld [vmem:[#allocation4 + $0x4] sm:$0xf]
        %v609 = vld [vmem:[#allocation4 + $0x8] sm:$0xf]
        %v610 = vld [vmem:[#allocation4 + $0xc] sm:$0xf]
        %v611 = vld [vmem:[#allocation4 + $0x10] sm:$0xf]
        %v612 = vld [vmem:[#allocation4 + $0x14] sm:$0xf]
        %v613 = vld [vmem:[#allocation4 + $0x18] sm:$0xf]
        %v614 = vld [vmem:[#allocation4 + $0x1c] sm:$0xf]
        %v615 = vld [vmem:[#allocation4 + $0x20] sm:$0xf]
        %v616 = vld [vmem:[#allocation4 + $0x24] sm:$0xf]
        %v617 = vld [vmem:[#allocation4 + $0x28] sm:$0xf]
        %v618 = vld [vmem:[#allocation4 + $0x2c] sm:$0xf]
        %v619 = vld [vmem:[#allocation4 + $0x30] sm:$0xf]
        %v620 = vld [vmem:[#allocation4 + $0x34] sm:$0xf]
        %v621 = vld [vmem:[#allocation4 + $0x38] sm:$0xf]
        %v622 = vld [vmem:[#allocation4 + $0x3c] sm:$0xf]
        %v623 = vld [vmem:[%s8] sm:$0x1]
        %v625 = vperm.slane %v623, 0
        %v643 = vunpack.c.l.b16 %v607
        %v644 = vunpack.c.l.b16 %v608
        %v645 = vunpack.c.l.b16 %v609
        %v646 = vunpack.c.l.b16 %v610
        %v647 = vunpack.c.l.b16 %v611
        %v648 = vunpack.c.l.b16 %v612
        %v649 = vunpack.c.l.b16 %v613
        %v650 = vunpack.c.l.b16 %v614
        %v651 = vunpack.c.l.b16 %v615
        %v652 = vunpack.c.l.b16 %v616
        %v653 = vunpack.c.l.b16 %v617
        %v654 = vunpack.c.l.b16 %v618
        %v655 = vunpack.c.l.b16 %v619
        %v656 = vunpack.c.l.b16 %v620
        %v657 = vunpack.c.l.b16 %v621
        %v658 = vunpack.c.l.b16 %v622
        %v659 = vpack.c.b16 %v644, %v643
        %v660 = vpack.c.b16 %v646, %v645
        %v661 = vpack.c.b16 %v648, %v647
        %v662 = vpack.c.b16 %v650, %v649
        %v663 = vpack.c.b16 %v652, %v651
        %v664 = vpack.c.b16 %v654, %v653
        %v665 = vpack.c.b16 %v656, %v655
        %v666 = vpack.c.b16 %v658, %v657
        %675 = vmatpush.bf16.msra.mxu0 %v666
        %676 = vmatpush.bf16.msra.mxu0 %v665
        %677 = vmatpush.bf16.msra.mxu0 %v664
        %678 = vmatpush.bf16.msra.mxu0 %v663
        %679 = vmatpush.bf16.msra.mxu0 %v662
        %680 = vmatpush.bf16.msra.mxu0 %v661
        %681 = vmatpush.bf16.msra.mxu0 %v660
        %682 = vmatpush.bf16.msra.mxu0 %v659
        %683 = vmatmul.bf16.gmra.mxu0 %v605
        %v684 = vpop.f32.mrf.mxu0
        %v685 = vadd.f32 %v625, %v684
        %v686 = vpop.f32.mrf.mxu0
        %v687 = vadd.f32 %v625, %v686
        %688 = vmatmul.bf16.gmra.mxu0 %v606
        %v689 = vpop.f32.mrf.mxu0
        %v690 = vadd.f32 %v625, %v689
        %v691 = vpop.f32.mrf.mxu0
        %v692 = vadd.f32 %v625, %v691
        %693 = vdwg.mxu0
        %vm694 = vcmask 64512
        %695 = vst.msk [vmem:[%s368] sm:$0xff] %vm694, %v685
        %696 = vst.msk [vmem:[%s368 + $0x8] sm:$0xff] %vm694, %v687
        %697 = vst.msk [vmem:[%s368 + $0x10] sm:$0xff] %vm694, %v690
        %698 = vst.msk [vmem:[%s368 + $0x18] sm:$0xff] %vm694, %v692
        %s699 = smul.u32 4, %s22
        %p700 = scmp.lt.s32.totalorder %s699, 7
        %s701 = scalar_select %p700, %s699, 7
        %s702 = smul.addr %s701, 8
        %s703 = scalar_lea.vmem %s9, %s702
        // Predicated region
        $region65: #{actor_critic_forward.1} parent=55 // pred_check
          %p704 = pneg %p234
        $region66: #{actor_critic_forward.1} parent=55 // pred_check_branch
          %706 = sbr.rel (%p704) target = $region68
        $region67: #{actor_critic_forward.1} parent=55 // pred_region
          %s707 = smul.u32 4, %s22
        $region68: #{actor_critic_forward.1} parent=55 // pred_fallthru
          _
      $region56: #{actor_critic_forward.1} parent=5 // pred_fallthru
        _
      %p708 = scmp.le.s32.totalorder 2, %s17
      // Predicated region
      $region69: #{actor_critic_forward.1} parent=5 // pred_check
        %p709 = pneg %p708
      $region70: #{actor_critic_forward.1} parent=5 // pred_check_branch
        %711 = sbr.rel (%p709) target = $region72
      $region71: #{actor_critic_forward.1} parent=5 // pred_region
        %s712 = ssub.s32 %s17, 2
        // Predicated region
        $region73: #{actor_critic_forward.1} parent=71 // pred_check
          %p713 = pneg %p240
        $region74: #{actor_critic_forward.1} parent=71 // pred_check_branch
          %715 = sbr.rel (%p713) target = $region76
        $region75: #{actor_critic_forward.1} parent=71 // pred_region
          %s716 = smul.u32 4, %s23
          %p717 = scmp.lt.s32.totalorder %s716, 7
          %s718 = scalar_select %p717, %s716, 7
          %s719 = smul.addr %s718, 8
          %s720 = scalar_lea.vmem %s9, %s719
        $region76: #{actor_critic_forward.1} parent=71 // pred_fallthru
          _
      $region72: #{actor_critic_forward.1} parent=5 // pred_fallthru
        _
    $region6: #{actor_critic_forward.1} parent=1 // loop_footer
      %s21 = sadd.s32 1, %s17
    $region7: #{actor_critic_forward.1} parent=1 // loop_footer_branch
      %16 = sbr.rel target = $region3
    $region8: #{actor_critic_forward.1} parent=1 // loop_exit
      _
    %721 = vsyncpa [#allocation3], 1
    %s722 = scalar_lea.sflag [#allocation3], 1
    %723 = vsyncpa %s722, 1
    %724 = vsyncpa [#allocation5], 1

</llo_original>
